<compile_context>
chip_gen: v5e
topology: v5e:2x2
jax: 0.10.0
libtpu: 0.0.40
codegen_flags: <defaults>
</compile_context>

<pallas_src>
import functools

import jax
import jax.numpy as jnp
from jax.experimental import pallas as pl
from jax.experimental.pallas import tpu as pltpu


def _add_noise_kernel(x_ref, noise_ref, o_ref, *, noise_level):
    # Pure elementwise in the input dtype: out = x + noise * noise_level.
    o_ref[...] = x_ref[...] + noise_ref[...] * noise_level


def _plan_layout(shape, itemsize):
    """Pick a lane-dense 2D slab (rows, lane) and a row-block size br."""
    n = 1
    for d in shape:
        n *= d

    # Prefer the widest 128-multiple lane width that still leaves >= 8 rows.
    lane = None
    for cand in (1024, 512, 256, 128):
        if n % cand == 0 and n // cand >= 8:
            lane = cand
            break
    if lane is None:
        for cand in (1024, 512, 256, 128):
            if n % cand == 0:
                lane = cand
                break
    if lane is None:
        # Total size not a multiple of 128: fall back to (B*C, T) as a single
        # full-extent block (always a legal block shape).
        lane = shape[-1]
        rows = n // lane
        return rows, lane, rows

    rows = n // lane

    # Sublane granularity of the second-minor block dim (8 for f32, 16 for bf16).
    gran = max(8, 32 // max(1, itemsize))
    # Target ~2 MiB per input block: with x/noise/out double-buffered this is
    # ~12 MiB of VMEM -> plenty of headroom even on v7x (64 MiB), while large
    # enough to sit near the HBM roofline on v5e/v6e/v7x.
    target = max(gran, min(rows, (2 * 1024 * 1024) // (lane * itemsize)))
    target = (target // gran) * gran

    br = None
    r = target
    while r >= gran:
        if rows % r == 0:
            br = r
            break
        r -= gran
    if br is None:
        br = rows  # full-extent row block (always legal)
    return rows, lane, br


def add_noise_to_multichannel_timeseries(x, key, noise_level=0.1):
    """out = x + N(0, noise_level^2) noise, same shape/dtype as x."""
    orig_shape = x.shape
    itemsize = jnp.dtype(x.dtype).itemsize
    rows, lane, br = _plan_layout(orig_shape, itemsize)

    x2 = x.reshape(rows, lane)
    # Noise generated in x's dtype (bf16 stays bf16 on v6e/v7x).
    noise = jax.random.normal(key, (rows, lane), dtype=x.dtype)

    grid = (rows // br,)
    out2 = pl.pallas_call(
        functools.partial(_add_noise_kernel, noise_level=noise_level),
        out_shape=jax.ShapeDtypeStruct((rows, lane), x.dtype),
        grid=grid,
        in_specs=[
            pl.BlockSpec((br, lane), lambda i: (i, 0)),  # x tile
            pl.BlockSpec((br, lane), lambda i: (i, 0)),  # noise tile
        ],
        out_specs=pl.BlockSpec((br, lane), lambda i: (i, 0)),
        # x is dead after the add; reuse its HBM buffer for the output.
        input_output_aliases={0: 0},
        compiler_params=pltpu.CompilerParams(
            # Blocks are independent -> shard across TensorCores (v7x megacore).
            dimension_semantics=("parallel",),
        ),
    )(x2, noise)
    return out2.reshape(orig_shape)


if __name__ == "__main__":
    key = jax.random.PRNGKey(0)
    x_key, noise_key = jax.random.split(key)

    B, C, T = 2, 4, 128
    noise_level = 0.1
    x = jax.random.normal(x_key, (B, C, T), dtype=jnp.float32)

    out = add_noise_to_multichannel_timeseries(x, noise_key, noise_level=noise_level)
    out = jax.block_until_ready(out)

    # Shape / dtype preserved.
    assert out.shape == x.shape and out.dtype == x.dtype

    # Exact reference using the same noise stream as the wrapper.
    rows, lane, _ = _plan_layout(x.shape, jnp.dtype(x.dtype).itemsize)
    noise_ref = jax.random.normal(noise_key, (rows, lane), dtype=x.dtype)
    expected = (x.reshape(rows, lane) + noise_ref * noise_level).reshape(x.shape)
    assert jnp.allclose(out, expected, atol=1e-6, rtol=1e-6), "mismatch vs reference"

    # Statistical sanity: residual ~ N(0, noise_level^2).
    resid = out - x
    resid_mean = float(jnp.mean(resid))
    resid_std = float(jnp.std(resid))
    assert abs(resid_mean) < 0.05, f"noise mean too large: {resid_mean}"
    assert 0.05 < resid_std < 0.2, f"noise std off: {resid_std}"

    print("KERNEL_OK")
</pallas_src>

<mosaic_0001>
module attributes {stable_mosaic.version = 11 : i64} {
  func.func @_add_noise_kernel(%arg0: i32, %arg1: memref<8x128xf32, #tpu.memory_space<vmem>>, %arg2: memref<8x128xf32, #tpu.memory_space<vmem>>, %arg3: memref<8x128xf32, #tpu.memory_space<vmem>>) attributes {dimension_semantics = [#tpu.dimension_semantics<parallel>], iteration_bounds = array<i64: 1>, scalar_prefetch = 0 : i64, scratch_operands = 0 : i64, tpu.core_type = #tpu.core_type<tc>, window_params = [{transform_indices = @transform_0, window_bounds = array<i64: 8, 128>}, {transform_indices = @transform_1, window_bounds = array<i64: 8, 128>}, {transform_indices = @transform_2, window_bounds = array<i64: 8, 128>}]} {
    %c0 = arith.constant 0 : index
    %c0_0 = arith.constant 0 : index
    %0 = vector.load %arg1[%c0, %c0_0] : memref<8x128xf32, #tpu.memory_space<vmem>>, vector<8x128xf32>
    %c0_1 = arith.constant 0 : index
    %c0_2 = arith.constant 0 : index
    %1 = vector.load %arg2[%c0_1, %c0_2] : memref<8x128xf32, #tpu.memory_space<vmem>>, vector<8x128xf32>
    %cst = arith.constant 1.000000e-01 : f32
    %2 = vector.broadcast %cst : f32 to vector<8x128xf32>
    %3 = arith.mulf %1, %2 : vector<8x128xf32>
    %4 = arith.addf %0, %3 : vector<8x128xf32>
    %c0_3 = arith.constant 0 : index
    %c0_4 = arith.constant 0 : index
    %5 = vector.load %arg3[%c0_3, %c0_4] : memref<8x128xf32, #tpu.memory_space<vmem>>, vector<8x128xf32>
    tpu.vector_store %arg3[%c0_3, %c0_4], %4 {strides = array<i32>} : memref<8x128xf32, #tpu.memory_space<vmem>>, vector<8x128xf32>,
    return
  }
  func.func @transform_0(%arg0: i32) -> (i32, i32) {
    %c0_i32 = arith.constant 0 : i32
    %c0_i32_0 = arith.constant 0 : i32
    return %arg0, %c0_i32 : i32, i32
  }
  func.func @transform_1(%arg0: i32) -> (i32, i32) {
    %c0_i32 = arith.constant 0 : i32
    %c0_i32_0 = arith.constant 0 : i32
    return %arg0, %c0_i32 : i32, i32
  }
  func.func @transform_2(%arg0: i32) -> (i32, i32) {
    %c0_i32 = arith.constant 0 : i32
    %c0_i32_0 = arith.constant 0 : i32
    return %arg0, %c0_i32 : i32, i32
  }
}

</mosaic_0001>

<llo_original>
// kernel: tpu_custom_call.1
$region0: #{tpu_custom_call.1}
  #allocation0 [shape = 'u32[]', space=smem, size = 0x4, offset = 0x4, fixed_abs, tag = 'smem constant byte address 0x4 - core index']
  #allocation1 [shape = 'u32[72,128]{1,0:T(1,128)}', space=vmem, size = 0x9000, scoped, tag = 'internal scratch']
  %s0 = inlined_call_operand.hbm [shape: f32[8,128], index: 0, kind: input, shape index: {}, may-alias: {0,2}]
  %s1 = inlined_call_operand.vmem [shape: f32[8,128], index: 1, kind: input, shape index: {}]
  %s2 = inlined_call_operand.hbm [shape: f32[8,128], index: 2, kind: output, shape index: {}, may-alias: {0,2}]
  %s3 = sld [smem:[#allocation0]]
  $region22: #{tpu_custom_call.1} parent=0
    _
  %s5 = ssub.s32 1, %s3
  %s6 = scalar_select 0, %s5, %s3
  $region1: #{tpu_custom_call.1} parent=0
    #allocation2 [shape = 'u8[4096]{0}', space=vmem, size = 0x1000, scoped, tag = 'input window, operand 0, single buffered']
    #allocation3 [shape = 's32[1]{0}', space=sflag, size = 0x4, scoped, tag = 'scoped memory for tpu_custom_call.1']
    #allocation4 [shape = 's32[1]{0}', space=sflag, size = 0x4, scoped, tag = 'scoped memory for tpu_custom_call.1']
    #allocation5 [shape = 'u8[4096]{0}', space=vmem, size = 0x1000, scoped, tag = 'output window, operand 0, single buffered']
    %7 = vsyncpa [#allocation3], 0
    %8 = vsyncpa [#allocation4], 0
    // Predicated region
    $region2: #{tpu_custom_call.1} parent=1 // pred_check
      _
    $region3: #{tpu_custom_call.1} parent=1 // pred_check_branch
      %10 = sbr.rel (0) target = $region5
    $region4: #{tpu_custom_call.1} parent=1 // pred_region
      %12 = vsyncadd [#allocation3], 0
      %s14 = sshll.u32 %s0, 4
      %s15 = int_to_ptr.hbm [resolvable:$true] %s14
      %s16 = sshll.u32 [#allocation2], 4
      %s17 = int_to_ptr.vmem [resolvable:$true] %s16
      %19 = dma.hbm_to_vmem [thread:$0]  %s15, 128, %s17, [#allocation3]
    $region5: #{tpu_custom_call.1} parent=1 // pred_fallthru
      _
    // Predicated region
    $region6: #{tpu_custom_call.1} parent=1 // pred_check
      _
    $region7: #{tpu_custom_call.1} parent=1 // pred_check_branch
      %21 = sbr.rel (0) target = $region9
    $region8: #{tpu_custom_call.1} parent=1 // pred_region
      _
    $region9: #{tpu_custom_call.1} parent=1 // pred_fallthru
      _
    // Predicated region
    $region10: #{tpu_custom_call.1} parent=1 // pred_check
      _
    $region11: #{tpu_custom_call.1} parent=1 // pred_check_branch
      %23 = sbr.rel (0) target = $region13
    $region12: #{tpu_custom_call.1} parent=1 // pred_region
      %25 = dma.done [#allocation3], 128
    $region13: #{tpu_custom_call.1} parent=1 // pred_fallthru
      _
    %v26 = vld [vmem:[#allocation2] sm:$0xff]
    %v27 = vld [vmem:[%s1] sm:$0xff]
    %v28 = vmul.f32 %v27, 0.1
    %v29 = vadd.f32 %v26, %v28
    %30 = vst [vmem:[#allocation5] sm:$0xff] %v29
    // Predicated region
    $region14: #{tpu_custom_call.1} parent=1 // pred_check
      _
    $region15: #{tpu_custom_call.1} parent=1 // pred_check_branch
      %32 = sbr.rel (0) target = $region17
    $region16: #{tpu_custom_call.1} parent=1 // pred_region
      %34 = vsyncadd [#allocation4], 0
      %s36 = sshll.u32 [#allocation5], 4
      %s37 = int_to_ptr.vmem [resolvable:$true] %s36
      %s38 = sshll.u32 %s2, 4
      %s39 = int_to_ptr.hbm [resolvable:$true] %s38
      %41 = dma.vmem_to_hbm [thread:$0]  %s37, 128, %s39, [#allocation4]
    $region17: #{tpu_custom_call.1} parent=1 // pred_fallthru
      _
    // Predicated region
    $region18: #{tpu_custom_call.1} parent=1 // pred_check
      _
    $region19: #{tpu_custom_call.1} parent=1 // pred_check_branch
      %43 = sbr.rel (0) target = $region21
    $region20: #{tpu_custom_call.1} parent=1 // pred_region
      %45 = dma.done [#allocation4], 128
    $region21: #{tpu_custom_call.1} parent=1 // pred_fallthru
      _
    %46 = vsyncpa [#allocation3], 1
    %47 = vsyncpa [#allocation4], 1

</llo_original>
